<compile_context>
chip_gen: v6e
topology: v6e:2x2x1
jax: 0.10.0
libtpu: 0.0.40
codegen_flags: <defaults>
</compile_context>

<pallas_src>
import jax
import jax.numpy as jnp
from jax import lax
from jax.experimental import pallas as pl
from jax.experimental.pallas import tpu as pltpu

# ---- small shapes consistent with the module's forward ----
BATCH = 2
IN_CH = 4
IMG = 16
PATCH = 4
EMBED = 32
N_PATCHES = (IMG // PATCH) ** 2      # 16 patches per image


def _round_up(x, m):
    return (x + m - 1) // m * m


def patch_embed_kernel(p_ref, w_ref, b_ref, o_ref):
    # p_ref: (TM, Kp) patches, w_ref: (Ep, Kp) weight (E-major, no transpose),
    # b_ref: (1, Ep) bias, o_ref: (TM, Ep).
    acc = lax.dot_general(
        p_ref[...], w_ref[...],
        dimension_numbers=(((1,), (1,)), ((), ())),   # contract K with K
        preferred_element_type=jnp.float32)
    o_ref[...] = (acc + b_ref[...]).astype(o_ref.dtype)


@jax.jit
def patch_embedding(x, weight, bias):
    """PatchEmbedding.forward: Conv2d(k=s=patch)(x).flatten(2).transpose(1, 2)."""
    B, C, H, W = x.shape
    E, _, P, _ = weight.shape            # derive patch size from the weight
    nh, nw = H // P, W // P
    n = nh * nw
    K = C * P * P
    M = B * n

    # im2col of non-overlapping patches: pure layout plumbing, fused into the
    # kernel's input DMA via allow_input_fusion (no extra HBM round trip).
    patches = (x.reshape(B, C, nh, P, nw, P)
                 .transpose(0, 2, 4, 1, 3, 5)          # (B, nh, nw, C, P, P)
                 .reshape(M, K))

    # Lane-dense padding: last dims multiples of 128 -> unmasked loads/stores,
    # full MXU result columns.  Rows tiled in TM (multiple of 8 sublanes).
    Ep = _round_up(E, 128)
    Kp = _round_up(K, 128)
    TM = min(512, _round_up(M, 8))
    Mp = _round_up(M, TM)

    patches = jnp.pad(patches, ((0, Mp - M), (0, Kp - K)))
    w = jnp.pad(weight.reshape(E, K), ((0, Ep - E), (0, Kp - K)))   # (Ep, Kp)
    b = jnp.pad(bias.reshape(1, E), ((0, 0), (0, Ep - E)))          # (1, Ep)

    itemsize = jnp.dtype(x.dtype).itemsize
    cost = pl.CostEstimate(
        flops=2 * Mp * Kp * Ep,
        transcendentals=0,
        bytes_accessed=itemsize * (Mp * Kp + Ep * Kp + Ep + Mp * Ep))

    out = pl.pallas_call(
        patch_embed_kernel,
        out_shape=jax.ShapeDtypeStruct((Mp, Ep), x.dtype),
        grid=(Mp // TM,),
        in_specs=[
            pl.BlockSpec((TM, Kp), lambda i: (i, 0)),
            pl.BlockSpec((Ep, Kp), lambda i: (0, 0)),
            pl.BlockSpec((1, Ep), lambda i: (0, 0)),
        ],
        out_specs=pl.BlockSpec((TM, Ep), lambda i: (i, 0)),
        compiler_params=pltpu.CompilerParams(
            dimension_semantics=("parallel",),
            allow_input_fusion=[True, True, True]),
        cost_estimate=cost,
    )(patches, w, b)

    return out[:M, :E].reshape(B, n, E)


# -------- pure-JAX reference mirroring the PyTorch module (verification) --------
def ref_patch_embedding(x, weight, bias):
    P = weight.shape[2]
    y = lax.conv_general_dilated(
        x, weight, window_strides=(P, P), padding="VALID",
        dimension_numbers=("NCHW", "OIHW", "NCHW"))
    y = y + bias.reshape(1, -1, 1, 1)
    B, E, hh, ww = y.shape
    return y.reshape(B, E, hh * ww).transpose(0, 2, 1)


if __name__ == "__main__":
    root = jax.random.PRNGKey(0)
    kx, kw, kb = jax.random.split(root, 3)
    x = jax.random.normal(kx, (BATCH, IN_CH, IMG, IMG), jnp.float32)
    # nn.Conv2d(in_channels=IN_CH, out_channels=EMBED, kernel_size=PATCH, stride=PATCH)
    weight = jax.random.normal(kw, (EMBED, IN_CH, PATCH, PATCH), jnp.float32) * 0.02
    bias = jax.random.normal(kb, (EMBED,), jnp.float32) * 0.02

    out = patch_embedding(x, weight, bias)
    out = jax.block_until_ready(out)

    expected = ref_patch_embedding(x, weight, bias)
    assert out.shape == (BATCH, N_PATCHES, EMBED)
    assert jnp.allclose(out, expected, atol=1e-4, rtol=1e-4), "mismatch vs reference"

    print("KERNEL_OK")
</pallas_src>

<mosaic_0001>
module attributes {stable_mosaic.version = 11 : i64} {
  func.func @patch_embed_kernel(%arg0: i32, %arg1: memref<32x128xf32, #tpu.memory_space<vmem>>, %arg2: memref<128x128xf32, #tpu.memory_space<vmem>>, %arg3: memref<1x128xf32, #tpu.memory_space<vmem>>, %arg4: memref<32x128xf32, #tpu.memory_space<vmem>>) attributes {dimension_semantics = [#tpu.dimension_semantics<parallel>], iteration_bounds = array<i64: 1>, scalar_prefetch = 0 : i64, scratch_operands = 0 : i64, tpu.core_type = #tpu.core_type<tc>, window_params = [{transform_indices = @transform_0, window_bounds = array<i64: 32, 128>}, {pipeline_mode = #tpu.pipeline_mode<synchronous>, transform_indices = @transform_1, window_bounds = array<i64: 128, 128>}, {pipeline_mode = #tpu.pipeline_mode<synchronous>, transform_indices = @transform_2, window_bounds = array<i64: 1, 128>}, {transform_indices = @transform_3, window_bounds = array<i64: 32, 128>}]} {
    %c0 = arith.constant 0 : index
    %c0_0 = arith.constant 0 : index
    %0 = vector.load %arg1[%c0, %c0_0] : memref<32x128xf32, #tpu.memory_space<vmem>>, vector<32x128xf32>
    %c0_1 = arith.constant 0 : index
    %c0_2 = arith.constant 0 : index
    %1 = vector.load %arg2[%c0_1, %c0_2] : memref<128x128xf32, #tpu.memory_space<vmem>>, vector<128x128xf32>
    %cst = arith.constant dense<0.000000e+00> : vector<32x128xf32>
    %2 = tpu.matmul %0, %1, %cst {dimension_numbers = #tpu.dot_dimension_numbers<[1], [1], [0], [0], [0, 0, 1, 0], [], []>} : vector<32x128xf32>, vector<128x128xf32>, vector<32x128xf32> -> vector<32x128xf32>
    %c0_3 = arith.constant 0 : index
    %c0_4 = arith.constant 0 : index
    %3 = vector.load %arg3[%c0_3, %c0_4] : memref<1x128xf32, #tpu.memory_space<vmem>>, vector<1x128xf32>
    %4 = vector.broadcast %3 : vector<1x128xf32> to vector<32x128xf32>
    %5 = arith.addf %2, %4 : vector<32x128xf32>
    %c0_5 = arith.constant 0 : index
    %c0_6 = arith.constant 0 : index
    %6 = vector.load %arg4[%c0_5, %c0_6] : memref<32x128xf32, #tpu.memory_space<vmem>>, vector<32x128xf32>
    tpu.vector_store %arg4[%c0_5, %c0_6], %5 {strides = array<i32>} : memref<32x128xf32, #tpu.memory_space<vmem>>, vector<32x128xf32>,
    return
  }
  func.func @transform_0(%arg0: i32) -> (i32, i32) {
    %c0_i32 = arith.constant 0 : i32
    %c0_i32_0 = arith.constant 0 : i32
    return %arg0, %c0_i32 : i32, i32
  }
  func.func @transform_1(%arg0: i32) -> (i32, i32) {
    %c0_i32 = arith.constant 0 : i32
    %c0_i32_0 = arith.constant 0 : i32
    %c0_i32_1 = arith.constant 0 : i32
    return %c0_i32, %c0_i32_0 : i32, i32
  }
  func.func @transform_2(%arg0: i32) -> (i32, i32) {
    %c0_i32 = arith.constant 0 : i32
    %c0_i32_0 = arith.constant 0 : i32
    %c0_i32_1 = arith.constant 0 : i32
    return %c0_i32, %c0_i32_0 : i32, i32
  }
  func.func @transform_3(%arg0: i32) -> (i32, i32) {
    %c0_i32 = arith.constant 0 : i32
    %c0_i32_0 = arith.constant 0 : i32
    return %arg0, %c0_i32 : i32, i32
  }
}

</mosaic_0001>

<llo_original>
// kernel: patch_embedding.2
$region0: #{patch_embedding.2}
  #allocation0 [shape = 'u32[]', space=smem, size = 0x4, offset = 0x4, fixed_abs, tag = 'smem constant byte address 0x4 - core index']
  #allocation1 [shape = 'u32[144,128]{1,0:T(1,128)}', space=vmem, size = 0x12000, scoped, tag = 'internal scratch']
  #allocation2 [shape = 'u32[2048]{0}', space=vmem, size = 0x2000, scoped, tag = 'scoped memory for patch_embedding.2']
  #allocation3 [shape = 'u32[2048]{0}', space=vmem, size = 0x2000, scoped, tag = 'scoped memory for patch_embedding.2']
  #allocation4 [shape = 'u32[2048]{0}', space=vmem, size = 0x2000, scoped, tag = 'scoped memory for patch_embedding.2']
  #allocation5 [shape = 'u32[2048]{0}', space=vmem, size = 0x2000, scoped, tag = 'scoped memory for patch_embedding.2']
  #allocation6 [shape = 'u32[2048]{0}', space=vmem, size = 0x2000, scoped, tag = 'scoped memory for patch_embedding.2']
  #allocation7 [shape = 'u32[2048]{0}', space=vmem, size = 0x2000, scoped, tag = 'scoped memory for patch_embedding.2']
  #allocation8 [shape = 'u32[2048]{0}', space=vmem, size = 0x2000, scoped, tag = 'scoped memory for patch_embedding.2']
  #allocation9 [shape = 'u32[2048]{0}', space=vmem, size = 0x2000, scoped, tag = 'scoped memory for patch_embedding.2']
  #allocation10 [shape = 'u32[2048]{0}', space=vmem, size = 0x2000, scoped, tag = 'scoped memory for patch_embedding.2']
  #allocation11 [shape = 'u32[2048]{0}', space=vmem, size = 0x2000, scoped, tag = 'scoped memory for patch_embedding.2']
  #allocation12 [shape = 'u32[2048]{0}', space=vmem, size = 0x2000, scoped, tag = 'scoped memory for patch_embedding.2']
  #allocation13 [shape = 'u32[2048]{0}', space=vmem, size = 0x2000, scoped, tag = 'scoped memory for patch_embedding.2']
  #allocation14 [shape = 'u32[2048]{0}', space=vmem, size = 0x2000, scoped, tag = 'scoped memory for patch_embedding.2']
  #allocation15 [shape = 'u32[2048]{0}', space=vmem, size = 0x2000, scoped, tag = 'scoped memory for patch_embedding.2']
  #allocation16 [shape = 'u32[2048]{0}', space=vmem, size = 0x2000, scoped, tag = 'scoped memory for patch_embedding.2']
  %s0 = inlined_call_operand.vmem [shape: f32[32,64], index: 0, kind: input, shape index: {}]
  %s1 = inlined_call_operand.<no memory space> [shape: f32[], index: 1, kind: input, shape index: {}]
  %s2 = inlined_call_operand.vmem [shape: f32[32,64], index: 2, kind: input, shape index: {}]
  %s3 = inlined_call_operand.vmem [shape: f32[1,32], index: 3, kind: input, shape index: {}]
  %s4 = inlined_call_operand.hbm [shape: f32[32,128], index: 4, kind: output, shape index: {}]
  %s5 = sld [smem:[#allocation0]]
  $region22: #{patch_embedding.2} parent=0
    _
  %s7 = ssub.s32 1, %s5
  %s8 = scalar_select 0, %s7, %s5
  %v9 = vstv %s1
  %v10 = vstv %s1
  %v11 = vstv %s1
  $region1: #{patch_embedding.2} parent=0
    #allocation17 [shape = 'u8[16384]{0}', space=vmem, size = 0x4000, scoped, tag = 'output window, operand 0, single buffered']
    #allocation18 [shape = 's32[1]{0}', space=sflag, size = 0x4, scoped, tag = 'scoped memory for patch_embedding.2']
    #allocation19 [shape = 'u8[16384]{0}', space=vmem, size = 0x4000, dematerialized = true, scoped, tag = 'FusionAdapter Buffer %fusion.2 = f32[32,128]{1,0:T(8,128)} fusion(%param_2.3, %param_1.5), kind=kLoop, calls=%fused_computation.3.clone, metadata={op_name="jit(patch_embedding)/jit(_pad)/pad" stack_frame_id=10}']
    #allocation20 [shape = 'u8[65536]{0}', space=vmem, size = 0x10000, dematerialized = true, scoped, tag = 'FusionAdapter Buffer %fusion.1 = f32[128,128]{1,0:T(8,128)} fusion(%param_0.6, %param_1.5), kind=kLoop, calls=%fused_computation.2.clone, metadata={op_name="jit(patch_embedding)/jit(_pad)/pad" stack_frame_id=12}']
    #allocation21 [shape = 'u8[512]{0}', space=vmem, size = 0x400, dematerialized = true, scoped, tag = 'FusionAdapter Buffer %fusion.3 = f32[1,128]{1,0:T(1,128)} fusion(%param_3.2, %param_1.5), kind=kLoop, calls=%fused_computation.4.clone, metadata={op_name="jit(patch_embedding)/jit(_pad)/pad" stack_frame_id=14}']
    %12 = vsyncpa [#allocation18], 0
    // Predicated region
    $region2: #{patch_embedding.2} parent=1 // pred_check
      _
    $region3: #{patch_embedding.2} parent=1 // pred_check_branch
      %14 = sbr.rel (0) target = $region5
    $region4: #{patch_embedding.2} parent=1 // pred_region
      _
    $region5: #{patch_embedding.2} parent=1 // pred_fallthru
      _
    // Predicated region
    $region6: #{patch_embedding.2} parent=1 // pred_check
      _
    $region7: #{patch_embedding.2} parent=1 // pred_check_branch
      %16 = sbr.rel (0) target = $region9
    $region8: #{patch_embedding.2} parent=1 // pred_region
      _
    $region9: #{patch_embedding.2} parent=1 // pred_fallthru
      _
    // Predicated region
    $region10: #{patch_embedding.2} parent=1 // pred_check
      _
    $region11: #{patch_embedding.2} parent=1 // pred_check_branch
      %18 = sbr.rel (0) target = $region13
    $region12: #{patch_embedding.2} parent=1 // pred_region
      _
    $region13: #{patch_embedding.2} parent=1 // pred_fallthru
      _
    %v19 = vld [vmem:[%s2] sm:$0xff]
    %v20 = vlaneseq
    %v21 = vand.u32 %v20, 127
    %vm23 = vcmp.lt.s32.totalorder %v21, 64
    %v24 = vsel %vm23, %v19, %v9
    %s26 = ssub.s32 256, 1
    %27 = vst [vmem:[#allocation19] sm:%s26] %v24
    %s28 = scalar_lea.vmem %s2, 8
    %v29 = vld [vmem:[%s28] sm:$0xff]
    %v30 = vlaneseq
    %v31 = vand.u32 %v30, 127
    %vm33 = vcmp.lt.s32.totalorder %v31, 64
    %v34 = vsel %vm33, %v29, %v9
    %s35 = scalar_lea.vmem [#allocation19], 8
    %s37 = ssub.s32 256, 1
    %38 = vst [vmem:[%s35] sm:%s37] %v34
    %s39 = scalar_lea.vmem %s2, 16
    %v40 = vld [vmem:[%s39] sm:$0xff]
    %v41 = vlaneseq
    %v42 = vand.u32 %v41, 127
    %vm44 = vcmp.lt.s32.totalorder %v42, 64
    %v45 = vsel %vm44, %v40, %v9
    %s46 = scalar_lea.vmem [#allocation19], 16
    %s48 = ssub.s32 256, 1
    %49 = vst [vmem:[%s46] sm:%s48] %v45
    %s50 = scalar_lea.vmem %s2, 24
    %v51 = vld [vmem:[%s50] sm:$0xff]
    %v52 = vlaneseq
    %v53 = vand.u32 %v52, 127
    %vm55 = vcmp.lt.s32.totalorder %v53, 64
    %v56 = vsel %vm55, %v51, %v9
    %s57 = scalar_lea.vmem [#allocation19], 24
    %s59 = ssub.s32 256, 1
    %60 = vst [vmem:[%s57] sm:%s59] %v56
    %v61 = vld [vmem:[%s0] sm:$0xff]
    %v62 = vlaneseq
    %v63 = vand.u32 %v62, 127
    %vm65 = vcmp.lt.s32.totalorder %v63, 64
    %v66 = vsel %vm65, %v61, %v10
    %s68 = ssub.s32 256, 1
    %69 = vst [vmem:[#allocation20] sm:%s68] %v66
    %s70 = scalar_lea.vmem %s0, 8
    %v71 = vld [vmem:[%s70] sm:$0xff]
    %v72 = vlaneseq
    %v73 = vand.u32 %v72, 127
    %vm75 = vcmp.lt.s32.totalorder %v73, 64
    %v76 = vsel %vm75, %v71, %v10
    %s77 = scalar_lea.vmem [#allocation20], 8
    %s79 = ssub.s32 256, 1
    %80 = vst [vmem:[%s77] sm:%s79] %v76
    %s81 = scalar_lea.vmem %s0, 16
    %v82 = vld [vmem:[%s81] sm:$0xff]
    %v83 = vlaneseq
    %v84 = vand.u32 %v83, 127
    %vm86 = vcmp.lt.s32.totalorder %v84, 64
    %v87 = vsel %vm86, %v82, %v10
    %s88 = scalar_lea.vmem [#allocation20], 16
    %s90 = ssub.s32 256, 1
    %91 = vst [vmem:[%s88] sm:%s90] %v87
    %s92 = scalar_lea.vmem %s0, 24
    %v93 = vld [vmem:[%s92] sm:$0xff]
    %v94 = vlaneseq
    %v95 = vand.u32 %v94, 127
    %vm97 = vcmp.lt.s32.totalorder %v95, 64
    %v98 = vsel %vm97, %v93, %v10
    %s99 = scalar_lea.vmem [#allocation20], 24
    %s101 = ssub.s32 256, 1
    %102 = vst [vmem:[%s99] sm:%s101] %v98
    %s103 = scalar_lea.vmem [#allocation20], 32
    %s105 = ssub.s32 256, 1
    %106 = vst [vmem:[%s103] sm:%s105] %v10
    %s107 = scalar_lea.vmem [#allocation20], 40
    %s109 = ssub.s32 256, 1
    %110 = vst [vmem:[%s107] sm:%s109] %v10
    %s111 = scalar_lea.vmem [#allocation20], 48
    %s113 = ssub.s32 256, 1
    %114 = vst [vmem:[%s111] sm:%s113] %v10
    %s115 = scalar_lea.vmem [#allocation20], 56
    %s117 = ssub.s32 256, 1
    %118 = vst [vmem:[%s115] sm:%s117] %v10
    %s119 = scalar_lea.vmem [#allocation20], 64
    %s121 = ssub.s32 256, 1
    %122 = vst [vmem:[%s119] sm:%s121] %v10
    %s123 = scalar_lea.vmem [#allocation20], 72
    %s125 = ssub.s32 256, 1
    %126 = vst [vmem:[%s123] sm:%s125] %v10
    %s127 = scalar_lea.vmem [#allocation20], 80
    %s129 = ssub.s32 256, 1
    %130 = vst [vmem:[%s127] sm:%s129] %v10
    %s131 = scalar_lea.vmem [#allocation20], 88
    %s133 = ssub.s32 256, 1
    %134 = vst [vmem:[%s131] sm:%s133] %v10
    %s135 = scalar_lea.vmem [#allocation20], 96
    %s137 = ssub.s32 256, 1
    %138 = vst [vmem:[%s135] sm:%s137] %v10
    %s139 = scalar_lea.vmem [#allocation20], 104
    %s141 = ssub.s32 256, 1
    %142 = vst [vmem:[%s139] sm:%s141] %v10
    %s143 = scalar_lea.vmem [#allocation20], 112
    %s145 = ssub.s32 256, 1
    %146 = vst [vmem:[%s143] sm:%s145] %v10
    %s147 = scalar_lea.vmem [#allocation20], 120
    %s149 = ssub.s32 256, 1
    %150 = vst [vmem:[%s147] sm:%s149] %v10
    %v151 = vld [vmem:[%s3] sm:$0x1]
    %v152 = vlaneseq
    %v153 = vshrl.u32 %v152, 7
    %vm155 = vcmp.lt.s32.totalorder %v153, 1
    %v156 = vsel %vm155, %v151, %v11
    %v157 = vlaneseq
    %v158 = vand.u32 %v157, 127
    %vm160 = vcmp.lt.s32.totalorder %v158, 32
    %v161 = vsel %vm160, %v156, %v11
    %s163 = ssub.s32 2, 1
    %164 = vst [vmem:[#allocation21] sm:%s163] %v161
    %v165 = vld [vmem:[#allocation19] sm:$0xff]
    %v166 = vld [vmem:[#allocation19 + $0x8] sm:$0xff]
    %v167 = vld [vmem:[#allocation19 + $0x10] sm:$0xff]
    %v168 = vld [vmem:[#allocation19 + $0x18] sm:$0xff]
    %v169 = vld [vmem:[#allocation20] sm:$0xff]
    %v170 = vld [vmem:[#allocation20 + $0x8] sm:$0xff]
    %v171 = vld [vmem:[#allocation20 + $0x10] sm:$0xff]
    %v172 = vld [vmem:[#allocation20 + $0x18] sm:$0xff]
    %v173 = vld [vmem:[#allocation20 + $0x20] sm:$0xff]
    %v174 = vld [vmem:[#allocation20 + $0x28] sm:$0xff]
    %v175 = vld [vmem:[#allocation20 + $0x30] sm:$0xff]
    %v176 = vld [vmem:[#allocation20 + $0x38] sm:$0xff]
    %v177 = vld [vmem:[#allocation20 + $0x40] sm:$0xff]
    %v178 = vld [vmem:[#allocation20 + $0x48] sm:$0xff]
    %v179 = vld [vmem:[#allocation20 + $0x50] sm:$0xff]
    %v180 = vld [vmem:[#allocation20 + $0x58] sm:$0xff]
    %v181 = vld [vmem:[#allocation20 + $0x60] sm:$0xff]
    %v182 = vld [vmem:[#allocation20 + $0x68] sm:$0xff]
    %v183 = vld [vmem:[#allocation20 + $0x70] sm:$0xff]
    %v184 = vld [vmem:[#allocation20 + $0x78] sm:$0xff]
    %v185 = vld [vmem:[#allocation21] sm:$0x1]
    %v187 = vlaneseq
    %v188 = vshrl.u32 %v187, 7
    %v189 = vsub.s32 0, %v188
    %v190 = vrot.slane %v185, %v189
    %192 = vmatprep.subr.mxu0 0.0
    %193 = vmatpush1.xpose.msra.mxu0 %v184
    %194 = vmatprep.subr.mxu0 0.0
    %195 = vmatpush1.xpose.msra.mxu0 %v183
    %196 = vmatprep.subr.mxu0 0.0
    %197 = vmatpush1.xpose.msra.mxu0 %v182
    %198 = vmatprep.subr.mxu0 0.0
    %199 = vmatpush1.xpose.msra.mxu0 %v181
    %200 = vmatprep.subr.mxu0 0.0
    %201 = vmatpush1.xpose.msra.mxu0 %v180
    %202 = vmatprep.subr.mxu0 0.0
    %203 = vmatpush1.xpose.msra.mxu0 %v179
    %204 = vmatprep.subr.mxu0 0.0
    %205 = vmatpush1.xpose.msra.mxu0 %v178
    %206 = vmatprep.subr.mxu0 0.0
    %207 = vmatpush1.xpose.msra.mxu0 %v177
    %208 = vmatprep.subr.mxu0 0.0
    %209 = vmatpush1.xpose.msra.mxu0 %v176
    %210 = vmatprep.subr.mxu0 0.0
    %211 = vmatpush1.xpose.msra.mxu0 %v175
    %212 = vmatprep.subr.mxu0 0.0
    %213 = vmatpush1.xpose.msra.mxu0 %v174
    %214 = vmatprep.subr.mxu0 0.0
    %215 = vmatpush1.xpose.msra.mxu0 %v173
    %216 = vmatprep.subr.mxu0 0.0
    %217 = vmatpush1.xpose.msra.mxu0 %v172
    %218 = vmatprep.subr.mxu0 0.0
    %219 = vmatpush1.xpose.msra.mxu0 %v171
    %220 = vmatprep.subr.mxu0 0.0
    %221 = vmatpush1.xpose.msra.mxu0 %v170
    %222 = vmatprep.subr.mxu0 0.0
    %223 = vmatpush1.xpose.msra.mxu0 %v169
    %224 = vmatprep.subr.mxu0 0.0
    %225 = vmatpush2.xpose.msra.mxu0 0.0
    %226 = vmatprep.subr.mxu0 0.0
    %227 = vmatpush2.xpose.msra.mxu0 0.0
    %228 = vmatprep.subr.mxu0 0.0
    %229 = vmatpush2.xpose.msra.mxu0 0.0
    %230 = vmatprep.subr.mxu0 0.0
    %231 = vmatpush2.xpose.msra.mxu0 0.0
    %232 = vmatprep.subr.mxu0 0.0
    %233 = vmatpush2.xpose.msra.mxu0 0.0
    %234 = vmatprep.subr.mxu0 0.0
    %235 = vmatpush2.xpose.msra.mxu0 0.0
    %236 = vmatprep.subr.mxu0 0.0
    %237 = vmatpush2.xpose.msra.mxu0 0.0
    %238 = vmatprep.subr.mxu0 0.0
    %239 = vmatpush2.xpose.msra.mxu0 0.0
    %240 = vmatprep.subr.mxu0 0.0
    %241 = vmatpush2.xpose.msra.mxu0 0.0
    %242 = vmatprep.subr.mxu0 0.0
    %243 = vmatpush2.xpose.msra.mxu0 0.0
    %244 = vmatprep.subr.mxu0 0.0
    %245 = vmatpush2.xpose.msra.mxu0 0.0
    %246 = vmatprep.subr.mxu0 0.0
    %247 = vmatpush2.xpose.msra.mxu0 0.0
    %248 = vmatprep.subr.mxu0 0.0
    %249 = vmatpush2.xpose.msra.mxu0 0.0
    %250 = vmatprep.subr.mxu0 0.0
    %251 = vmatpush2.xpose.msra.mxu0 0.0
    %252 = vmatprep.subr.mxu0 0.0
    %253 = vmatpush2.xpose.msra.mxu0 0.0
    %254 = vmatprep.subr.mxu0 0.0
    %255 = vmatpush2.xpose.msra.mxu0 0.0
    %256 = vmatprep.mubr.f32.mxu0 0.0
    %257 = vmatmul.mubr.f32.gmra.mxu0 %v165
    %v258 = vpop.f32.mrf.mxu0
    %v259 = vadd.f32 %v190, %v258
    %v260 = vpop.f32.mrf.mxu0
    %261 = vmatprep.mubr.f32.mxu0 0.0
    %262 = vmatmul.mubr.f32.gmra.mxu0 %v166
    %v263 = vpop.f32.mrf.mxu0
    %v264 = vadd.f32 %v190, %v263
    %v265 = vpop.f32.mrf.mxu0
    %266 = vmatprep.mubr.f32.mxu0 0.0
    %267 = vmatmul.mubr.f32.gmra.mxu0 %v167
    %v268 = vpop.f32.mrf.mxu0
    %v269 = vadd.f32 %v190, %v268
    %v270 = vpop.f32.mrf.mxu0
    %271 = vmatprep.mubr.f32.mxu0 0.0
    %272 = vmatmul.mubr.f32.gmra.mxu0 %v168
    %v273 = vpop.f32.mrf.mxu0
    %v274 = vadd.f32 %v190, %v273
    %v275 = vpop.f32.mrf.mxu0
    %276 = vdwg.mxu0
    %277 = vst [vmem:[#allocation17] sm:$0xff] %v259
    %278 = vst [vmem:[#allocation17 + $0x8] sm:$0xff] %v264
    %279 = vst [vmem:[#allocation17 + $0x10] sm:$0xff] %v269
    %280 = vst [vmem:[#allocation17 + $0x18] sm:$0xff] %v274
    // Predicated region
    $region14: #{patch_embedding.2} parent=1 // pred_check
      _
    $region15: #{patch_embedding.2} parent=1 // pred_check_branch
      %282 = sbr.rel (0) target = $region17
    $region16: #{patch_embedding.2} parent=1 // pred_region
      %s284 = ssub.s32 512, 512
      %285 = vsyncadd [#allocation18], %s284
      %s286 = sshll.u32 [#allocation17], 4
      %s287 = int_to_ptr.vmem [resolvable:$true] %s286
      %292 = dma.vmem_to_hbm [thread:$0]  %s287, 512, %s4, [#allocation18], 128, 128, 8
    $region17: #{patch_embedding.2} parent=1 // pred_fallthru
      _
    // Predicated region
    $region18: #{patch_embedding.2} parent=1 // pred_check
      _
    $region19: #{patch_embedding.2} parent=1 // pred_check_branch
      %294 = sbr.rel (0) target = $region21
    $region20: #{patch_embedding.2} parent=1 // pred_region
      %295 = dma.done [#allocation18], 512
    $region21: #{patch_embedding.2} parent=1 // pred_fallthru
      _
    %296 = vsyncpa [#allocation18], 1

</llo_original>
